<compile_context>
chip_gen: v6e
topology: v6e:2x2x1
jax: 0.10.0
libtpu: 0.0.40
codegen_flags: <defaults>
</compile_context>

<pallas_src>
from functools import lru_cache

import numpy as np
import jax
import jax.numpy as jnp
from jax import lax
from jax.experimental import pallas as pl
from jax.experimental.pallas import tpu as pltpu

NUM_MFK = 8          # num_MFKs
NUM_CLASSES = 5
CONV_OUT = 64
KSIZE = 7
STRIDE = 3
PAD = 1
POOL_OUT = 10


# ----------------------------- fused Pallas kernel -----------------------------

def _fused_kernel(xp_ref, gp_ref, wmat_ref, cb_ref, qk_ref, fcb_ref, o_ref):
    # Per grid step (one batch row):
    #   xp:  (1, Lout, M*K)  im2col of the raw signal, pre-tiled over modes
    #   gp:  (Lout, M*K)     im2col of per-mode Wiener gains (batch independent)
    #   wmat:(M*K, 64)       conv weights, (m,k) contraction on rows
    #   cb:  (1, 64)         conv bias
    #   qk:  (5, Lout, 64)   fused pool+fc tensor: qk[n,t,c] = sum_i poolw[i,t]*fcW[n,c*10+i]
    #   fcb: (1, 5)          fc bias
    #   o:   (1, 1, 5)       logits for this batch row

    # Wiener feature extraction fused with im2col: one aligned VPU multiply.
    patches = xp_ref[0] * gp_ref[...]                                   # (Lout, 56)

    # Conv1d(8 -> 64, k=7, s=3, p=1) + bias + ReLU as one MXU matmul (K = 56).
    conv = jnp.dot(patches, wmat_ref[...], preferred_element_type=jnp.float32)
    conv = jnp.maximum(conv + cb_ref[...], 0.0)                         # (Lout, 64)

    # AdaptiveAvgPool1d(10) + Flatten + Linear(640 -> 5), fully folded into qk:
    #   logits[n] = sum_{t,c} conv[t,c] * qk[n,t,c] + fcb[n]
    # 5 independent multiply + reduce ops (no serial matmul chain, no pool matrix).
    lane = lax.broadcasted_iota(jnp.int32, (1, NUM_CLASSES), 1)
    acc = fcb_ref[...]                                                  # (1, 5)
    for n in range(NUM_CLASSES):                                        # static unroll (5)
        s = jnp.sum(conv * qk_ref[n], axis=1, keepdims=True)            # (Lout, 1) lane reduce
        s = jnp.sum(s, axis=0, keepdims=True)                           # (1, 1)   sublane reduce
        acc = acc + jnp.where(lane == n, s, 0.0)                        # place in class lane n
    o_ref[0] = acc


# ----------------------------- glue helpers -----------------------------

@lru_cache(maxsize=None)
def _pool_weights(lin, lout=POOL_OUT):
    """AdaptiveAvgPool1d weights, shape (lout, lin). Batch independent; built once
    per Lout and constant-folded into the jitted program."""
    P = np.zeros((lout, lin), dtype=np.float32)
    for i in range(lout):
        s = (i * lin) // lout
        e = -(-((i + 1) * lin) // lout)      # ceil
        P[i, s:e] = 1.0 / (e - s)
    return P


def init_params(ff, key):
    L = ff.shape[0]
    k1, k2, k3, k4 = jax.random.split(key, 4)
    return dict(
        fc=jnp.linspace(0.0, ff[-1], NUM_MFK).reshape(NUM_MFK, 1).astype(jnp.float32),
        alpha=jnp.linspace(25000.0, 15000.0, NUM_MFK).reshape(NUM_MFK, 1).astype(jnp.float32),
        w=jnp.linspace(0.0, ff[-1], L).reshape(1, L).astype(jnp.float32),
        conv_w=0.05 * jax.random.normal(k1, (CONV_OUT, NUM_MFK, KSIZE), jnp.float32),
        conv_b=0.05 * jax.random.normal(k2, (CONV_OUT,), jnp.float32),
        fc_w=0.05 * jax.random.normal(k3, (NUM_CLASSES, CONV_OUT * POOL_OUT), jnp.float32),
        fc_b=0.05 * jax.random.normal(k4, (NUM_CLASSES,), jnp.float32),
    )


@jax.jit
def mcn_wfk_forward(x, p):
    B, cin, L = x.shape
    assert cin == 1, "module semantics require in_channels == 1"
    assert p["w"].shape[-1] == L, "len(ff) must equal the signal length"
    Lout = (L + 2 * PAD - KSIZE) // STRIDE + 1
    MK = NUM_MFK * KSIZE

    # ---- parameter-only preprocessing (cheap XLA glue, traced once under jit) ----
    # Closed-form per-mode Wiener gains: g[i] = filt[i] * prod_{j<i}(1 - filt[j]).
    filt = 1.0 / (1.0 + 2.0 * p["alpha"] * (p["w"] - p["fc"]) ** 2)        # (M, L)
    cum = jnp.cumprod(1.0 - filt, axis=0)
    gains = filt * jnp.concatenate(
        [jnp.ones((1, L), jnp.float32), cum[:-1]], axis=0)                 # (M, L)

    idx = STRIDE * np.arange(Lout)[:, None] + np.arange(KSIZE)[None, :]    # (Lout, K)
    g_pad = jnp.pad(gains, ((0, 0), (PAD, PAD)))                           # (M, L+2)
    gp = jnp.transpose(g_pad[:, idx], (1, 0, 2)).reshape(Lout, MK)         # (Lout, 56)

    wmat = p["conv_w"].reshape(CONV_OUT, MK).T                             # (56, 64)
    cb = p["conv_b"].reshape(1, CONV_OUT)

    # Fused pool + flatten + fc tensor (batch independent, no O(B^2) pool matrix):
    #   qk[n, t, c] = sum_i poolw[i, t] * fc_w[n, c*POOL_OUT + i]
    poolw = jnp.asarray(_pool_weights(Lout))                               # (10, Lout)
    fc3 = p["fc_w"].reshape(NUM_CLASSES, CONV_OUT, POOL_OUT)               # fcW[n, c, i]
    qk = jnp.einsum("it,nci->ntc", poolw, fc3)                             # (5, Lout, 64)
    fcb = p["fc_b"].reshape(1, NUM_CLASSES)

    # ---- data-side im2col, pre-tiled over the mode axis (review item #1) ----
    x_pad = jnp.pad(x[:, 0, :], ((0, 0), (PAD, PAD)))                      # (B, L+2)
    xw = x_pad[:, idx]                                                     # (B, Lout, K)
    xp = jnp.broadcast_to(
        xw[:, :, None, :], (B, Lout, NUM_MFK, KSIZE)).reshape(B, Lout, MK)  # (B, Lout, 56)

    out = pl.pallas_call(
        _fused_kernel,
        grid=(B,),
        out_shape=jax.ShapeDtypeStruct((B, 1, NUM_CLASSES), jnp.float32),
        in_specs=[
            pl.BlockSpec((1, Lout, MK), lambda b: (b, 0, 0)),              # xp  (per batch row)
            pl.BlockSpec((Lout, MK), lambda b: (0, 0)),                    # gp  (resident)
            pl.BlockSpec((MK, CONV_OUT), lambda b: (0, 0)),                # wmat
            pl.BlockSpec((1, CONV_OUT), lambda b: (0, 0)),                 # conv bias
            pl.BlockSpec((NUM_CLASSES, Lout, CONV_OUT), lambda b: (0, 0, 0)),  # qk
            pl.BlockSpec((1, NUM_CLASSES), lambda b: (0, 0)),              # fc bias
        ],
        out_specs=pl.BlockSpec((1, 1, NUM_CLASSES), lambda b: (b, 0, 0)),
        compiler_params=pltpu.CompilerParams(
            dimension_semantics=("parallel",)),
    )(xp, gp, wmat, cb, qk, fcb)
    return out[:, 0, :]


# ----------------------------- pure-JAX reference -----------------------------

def reference_forward(x, p):
    B, _, L = x.shape
    filt = 1.0 / (1.0 + 2.0 * p["alpha"] * (p["w"] - p["fc"]) ** 2)        # (num, L)
    rem = x
    outs = []
    for ii in range(NUM_MFK):
        cur = rem * filt[ii, :]
        outs.append(cur)
        rem = rem - cur
    y = jnp.concatenate(outs, axis=1)                                      # (B, 8, L)
    y_pad = jnp.pad(y, ((0, 0), (0, 0), (PAD, PAD)))
    Lout = (L + 2 * PAD - KSIZE) // STRIDE + 1
    conv = jnp.stack(
        [jnp.einsum("ock,bck->bo", p["conv_w"],
                    y_pad[:, :, t * STRIDE:t * STRIDE + KSIZE]) for t in range(Lout)],
        axis=-1) + p["conv_b"][None, :, None]
    conv = jnp.maximum(conv, 0.0)                                          # (B, 64, Lout)
    pooled = []
    for i in range(POOL_OUT):
        s = (i * Lout) // POOL_OUT
        e = -(-((i + 1) * Lout) // POOL_OUT)
        pooled.append(conv[:, :, s:e].mean(axis=-1))
    pooled = jnp.stack(pooled, axis=-1)                                    # (B, 64, 10)
    flat = pooled.reshape(B, -1)
    return flat @ p["fc_w"].T + p["fc_b"]


# ----------------------------- main -----------------------------

if __name__ == "__main__":
    B, L = 2, 128                      # small shapes: batch=2, in_channels=1, len=128
    key = jax.random.PRNGKey(0)
    kx, kp = jax.random.split(key)

    ff = jnp.linspace(0.0, 1.0, L)     # frequency grid `ff` with len(ff) == signal length
    params = init_params(ff, kp)
    x = jax.random.normal(kx, (B, 1, L), jnp.float32)

    out = mcn_wfk_forward(x, params)
    out = jax.block_until_ready(out)
    assert out.shape == (B, NUM_CLASSES)

    ref = reference_forward(x, params)
    if not np.allclose(np.asarray(out), np.asarray(ref), rtol=1e-3, atol=1e-3):
        raise AssertionError("Pallas kernel output does not match JAX reference")

    print("KERNEL_OK")
</pallas_src>

<mosaic_0001>
module attributes {stable_mosaic.version = 11 : i64} {
  func.func @_fused_kernel(%arg0: i32, %arg1: memref<1x42x56xf32, #tpu.memory_space<vmem>>, %arg2: memref<42x56xf32, #tpu.memory_space<vmem>>, %arg3: memref<56x64xf32, #tpu.memory_space<vmem>>, %arg4: memref<1x64xf32, #tpu.memory_space<vmem>>, %arg5: memref<5x42x64xf32, #tpu.memory_space<vmem>>, %arg6: memref<1x5xf32, #tpu.memory_space<vmem>>, %arg7: memref<1x1x5xf32, #tpu.memory_space<vmem>>) attributes {dimension_semantics = [#tpu.dimension_semantics<parallel>], iteration_bounds = array<i64: 2>, scalar_prefetch = 0 : i64, scratch_operands = 0 : i64, tpu.core_type = #tpu.core_type<tc>, window_params = [{transform_indices = @transform_0, window_bounds = array<i64: 1, 42, 56>}, {pipeline_mode = #tpu.pipeline_mode<synchronous>, transform_indices = @transform_1, window_bounds = array<i64: 42, 56>}, {pipeline_mode = #tpu.pipeline_mode<synchronous>, transform_indices = @transform_2, window_bounds = array<i64: 56, 64>}, {pipeline_mode = #tpu.pipeline_mode<synchronous>, transform_indices = @transform_3, window_bounds = array<i64: 1, 64>}, {pipeline_mode = #tpu.pipeline_mode<synchronous>, transform_indices = @transform_4, window_bounds = array<i64: 5, 42, 64>}, {pipeline_mode = #tpu.pipeline_mode<synchronous>, transform_indices = @transform_5, window_bounds = array<i64: 1, 5>}, {transform_indices = @transform_6, window_bounds = array<i64: 1, 1, 5>}]} {
    %c0 = arith.constant 0 : index
    %c0_0 = arith.constant 0 : index
    %c0_1 = arith.constant 0 : index
    %0 = vector.load %arg1[%c0, %c0_0, %c0_1] : memref<1x42x56xf32, #tpu.memory_space<vmem>>, vector<1x42x56xf32>
    %1 = vector.shape_cast %0 : vector<1x42x56xf32> to vector<42x56xf32>
    %c0_2 = arith.constant 0 : index
    %c0_3 = arith.constant 0 : index
    %2 = vector.load %arg2[%c0_2, %c0_3] : memref<42x56xf32, #tpu.memory_space<vmem>>, vector<42x56xf32>
    %3 = arith.mulf %1, %2 : vector<42x56xf32>
    %c0_4 = arith.constant 0 : index
    %c0_5 = arith.constant 0 : index
    %4 = vector.load %arg3[%c0_4, %c0_5] : memref<56x64xf32, #tpu.memory_space<vmem>>, vector<56x64xf32>
    %cst = arith.constant dense<0.000000e+00> : vector<42x64xf32>
    %5 = tpu.matmul %3, %4, %cst {dimension_numbers = #tpu.dot_dimension_numbers<[1], [0], [0], [1], [0, 0, 1, 1], [], []>} : vector<42x56xf32>, vector<56x64xf32>, vector<42x64xf32> -> vector<42x64xf32>
    %c0_6 = arith.constant 0 : index
    %c0_7 = arith.constant 0 : index
    %6 = vector.load %arg4[%c0_6, %c0_7] : memref<1x64xf32, #tpu.memory_space<vmem>>, vector<1x64xf32>
    %7 = vector.broadcast %6 : vector<1x64xf32> to vector<42x64xf32>
    %8 = arith.addf %5, %7 : vector<42x64xf32>
    %cst_8 = arith.constant 0.000000e+00 : f32
    %9 = vector.broadcast %cst_8 : f32 to vector<42x64xf32>
    %10 = arith.maximumf %8, %9 : vector<42x64xf32>
    %11 = tpu.iota {dimensions = array<i32: 1>} : vector<1x5xi32>
    %c0_9 = arith.constant 0 : index
    %c0_10 = arith.constant 0 : index
    %12 = vector.load %arg6[%c0_9, %c0_10] : memref<1x5xf32, #tpu.memory_space<vmem>>, vector<1x5xf32>
    %c0_11 = arith.constant 0 : index
    %c0_12 = arith.constant 0 : index
    %c0_13 = arith.constant 0 : index
    %13 = vector.load %arg5[%c0_11, %c0_12, %c0_13] : memref<5x42x64xf32, #tpu.memory_space<vmem>>, vector<1x42x64xf32>
    %14 = vector.shape_cast %13 : vector<1x42x64xf32> to vector<42x64xf32>
    %15 = arith.mulf %10, %14 : vector<42x64xf32>
    %cst_14 = arith.constant dense<0.000000e+00> : vector<42xf32>
    %16 = vector.multi_reduction <add>, %15, %cst_14 [1] : vector<42x64xf32> to vector<42xf32>
    %17 = vector.shape_cast %16 : vector<42xf32> to vector<42x1xf32>
    %cst_15 = arith.constant dense<0.000000e+00> : vector<1xf32>
    %18 = vector.multi_reduction <add>, %17, %cst_15 [0] : vector<42x1xf32> to vector<1xf32>
    %19 = vector.shape_cast %18 : vector<1xf32> to vector<1x1xf32>
    %c0_i32 = arith.constant 0 : i32
    %20 = vector.broadcast %c0_i32 : i32 to vector<1x5xi32>
    %21 = arith.cmpi eq, %11, %20 : vector<1x5xi32>
    %cst_16 = arith.constant 0.000000e+00 : f32
    %22 = vector.shape_cast %19 : vector<1x1xf32> to vector<1x1xf32>
    %23 = vector.broadcast %22 : vector<1x1xf32> to vector<1x5xf32>
    %24 = vector.broadcast %cst_16 : f32 to vector<1x5xf32>
    %25 = arith.select %21, %23, %24 : vector<1x5xi1>, vector<1x5xf32>
    %26 = arith.addf %12, %25 : vector<1x5xf32>
    %c1 = arith.constant 1 : index
    %c0_17 = arith.constant 0 : index
    %c0_18 = arith.constant 0 : index
    %27 = vector.load %arg5[%c1, %c0_17, %c0_18] : memref<5x42x64xf32, #tpu.memory_space<vmem>>, vector<1x42x64xf32>
    %28 = vector.shape_cast %27 : vector<1x42x64xf32> to vector<42x64xf32>
    %29 = arith.mulf %10, %28 : vector<42x64xf32>
    %cst_19 = arith.constant dense<0.000000e+00> : vector<42xf32>
    %30 = vector.multi_reduction <add>, %29, %cst_19 [1] : vector<42x64xf32> to vector<42xf32>
    %31 = vector.shape_cast %30 : vector<42xf32> to vector<42x1xf32>
    %cst_20 = arith.constant dense<0.000000e+00> : vector<1xf32>
    %32 = vector.multi_reduction <add>, %31, %cst_20 [0] : vector<42x1xf32> to vector<1xf32>
    %33 = vector.shape_cast %32 : vector<1xf32> to vector<1x1xf32>
    %c1_i32 = arith.constant 1 : i32
    %34 = vector.broadcast %c1_i32 : i32 to vector<1x5xi32>
    %35 = arith.cmpi eq, %11, %34 : vector<1x5xi32>
    %cst_21 = arith.constant 0.000000e+00 : f32
    %36 = vector.shape_cast %33 : vector<1x1xf32> to vector<1x1xf32>
    %37 = vector.broadcast %36 : vector<1x1xf32> to vector<1x5xf32>
    %38 = vector.broadcast %cst_21 : f32 to vector<1x5xf32>
    %39 = arith.select %35, %37, %38 : vector<1x5xi1>, vector<1x5xf32>
    %40 = arith.addf %26, %39 : vector<1x5xf32>
    %c2 = arith.constant 2 : index
    %c0_22 = arith.constant 0 : index
    %c0_23 = arith.constant 0 : index
    %41 = vector.load %arg5[%c2, %c0_22, %c0_23] : memref<5x42x64xf32, #tpu.memory_space<vmem>>, vector<1x42x64xf32>
    %42 = vector.shape_cast %41 : vector<1x42x64xf32> to vector<42x64xf32>
    %43 = arith.mulf %10, %42 : vector<42x64xf32>
    %cst_24 = arith.constant dense<0.000000e+00> : vector<42xf32>
    %44 = vector.multi_reduction <add>, %43, %cst_24 [1] : vector<42x64xf32> to vector<42xf32>
    %45 = vector.shape_cast %44 : vector<42xf32> to vector<42x1xf32>
    %cst_25 = arith.constant dense<0.000000e+00> : vector<1xf32>
    %46 = vector.multi_reduction <add>, %45, %cst_25 [0] : vector<42x1xf32> to vector<1xf32>
    %47 = vector.shape_cast %46 : vector<1xf32> to vector<1x1xf32>
    %c2_i32 = arith.constant 2 : i32
    %48 = vector.broadcast %c2_i32 : i32 to vector<1x5xi32>
    %49 = arith.cmpi eq, %11, %48 : vector<1x5xi32>
    %cst_26 = arith.constant 0.000000e+00 : f32
    %50 = vector.shape_cast %47 : vector<1x1xf32> to vector<1x1xf32>
    %51 = vector.broadcast %50 : vector<1x1xf32> to vector<1x5xf32>
    %52 = vector.broadcast %cst_26 : f32 to vector<1x5xf32>
    %53 = arith.select %49, %51, %52 : vector<1x5xi1>, vector<1x5xf32>
    %54 = arith.addf %40, %53 : vector<1x5xf32>
    %c3 = arith.constant 3 : index
    %c0_27 = arith.constant 0 : index
    %c0_28 = arith.constant 0 : index
    %55 = vector.load %arg5[%c3, %c0_27, %c0_28] : memref<5x42x64xf32, #tpu.memory_space<vmem>>, vector<1x42x64xf32>
    %56 = vector.shape_cast %55 : vector<1x42x64xf32> to vector<42x64xf32>
    %57 = arith.mulf %10, %56 : vector<42x64xf32>
    %cst_29 = arith.constant dense<0.000000e+00> : vector<42xf32>
    %58 = vector.multi_reduction <add>, %57, %cst_29 [1] : vector<42x64xf32> to vector<42xf32>
    %59 = vector.shape_cast %58 : vector<42xf32> to vector<42x1xf32>
    %cst_30 = arith.constant dense<0.000000e+00> : vector<1xf32>
    %60 = vector.multi_reduction <add>, %59, %cst_30 [0] : vector<42x1xf32> to vector<1xf32>
    %61 = vector.shape_cast %60 : vector<1xf32> to vector<1x1xf32>
    %c3_i32 = arith.constant 3 : i32
    %62 = vector.broadcast %c3_i32 : i32 to vector<1x5xi32>
    %63 = arith.cmpi eq, %11, %62 : vector<1x5xi32>
    %cst_31 = arith.constant 0.000000e+00 : f32
    %64 = vector.shape_cast %61 : vector<1x1xf32> to vector<1x1xf32>
    %65 = vector.broadcast %64 : vector<1x1xf32> to vector<1x5xf32>
    %66 = vector.broadcast %cst_31 : f32 to vector<1x5xf32>
    %67 = arith.select %63, %65, %66 : vector<1x5xi1>, vector<1x5xf32>
    %68 = arith.addf %54, %67 : vector<1x5xf32>
    %c4 = arith.constant 4 : index
    %c0_32 = arith.constant 0 : index
    %c0_33 = arith.constant 0 : index
    %69 = vector.load %arg5[%c4, %c0_32, %c0_33] : memref<5x42x64xf32, #tpu.memory_space<vmem>>, vector<1x42x64xf32>
    %70 = vector.shape_cast %69 : vector<1x42x64xf32> to vector<42x64xf32>
    %71 = arith.mulf %10, %70 : vector<42x64xf32>
    %cst_34 = arith.constant dense<0.000000e+00> : vector<42xf32>
    %72 = vector.multi_reduction <add>, %71, %cst_34 [1] : vector<42x64xf32> to vector<42xf32>
    %73 = vector.shape_cast %72 : vector<42xf32> to vector<42x1xf32>
    %cst_35 = arith.constant dense<0.000000e+00> : vector<1xf32>
    %74 = vector.multi_reduction <add>, %73, %cst_35 [0] : vector<42x1xf32> to vector<1xf32>
    %75 = vector.shape_cast %74 : vector<1xf32> to vector<1x1xf32>
    %c4_i32 = arith.constant 4 : i32
    %76 = vector.broadcast %c4_i32 : i32 to vector<1x5xi32>
    %77 = arith.cmpi eq, %11, %76 : vector<1x5xi32>
    %cst_36 = arith.constant 0.000000e+00 : f32
    %78 = vector.shape_cast %75 : vector<1x1xf32> to vector<1x1xf32>
    %79 = vector.broadcast %78 : vector<1x1xf32> to vector<1x5xf32>
    %80 = vector.broadcast %cst_36 : f32 to vector<1x5xf32>
    %81 = arith.select %77, %79, %80 : vector<1x5xi1>, vector<1x5xf32>
    %82 = arith.addf %68, %81 : vector<1x5xf32>
    %c0_37 = arith.constant 0 : index
    %c0_38 = arith.constant 0 : index
    %c0_39 = arith.constant 0 : index
    %83 = vector.load %arg7[%c0_37, %c0_38, %c0_39] : memref<1x1x5xf32, #tpu.memory_space<vmem>>, vector<1x1x5xf32>
    %84 = vector.shape_cast %83 : vector<1x1x5xf32> to vector<1x5xf32>
    %85 = vector.shape_cast %82 : vector<1x5xf32> to vector<1x1x5xf32>
    tpu.vector_store %arg7[%c0_37, %c0_38, %c0_39], %85 {strides = array<i32>} : memref<1x1x5xf32, #tpu.memory_space<vmem>>, vector<1x1x5xf32>,
    return
  }
  func.func @transform_0(%arg0: i32) -> (i32, i32, i32) {
    %c0_i32 = arith.constant 0 : i32
    %c0_i32_0 = arith.constant 0 : i32
    %c0_i32_1 = arith.constant 0 : i32
    return %arg0, %c0_i32, %c0_i32_0 : i32, i32, i32
  }
  func.func @transform_1(%arg0: i32) -> (i32, i32) {
    %c0_i32 = arith.constant 0 : i32
    %c0_i32_0 = arith.constant 0 : i32
    %c0_i32_1 = arith.constant 0 : i32
    return %c0_i32, %c0_i32_0 : i32, i32
  }
  func.func @transform_2(%arg0: i32) -> (i32, i32) {
    %c0_i32 = arith.constant 0 : i32
    %c0_i32_0 = arith.constant 0 : i32
    %c0_i32_1 = arith.constant 0 : i32
    return %c0_i32, %c0_i32_0 : i32, i32
  }
  func.func @transform_3(%arg0: i32) -> (i32, i32) {
    %c0_i32 = arith.constant 0 : i32
    %c0_i32_0 = arith.constant 0 : i32
    %c0_i32_1 = arith.constant 0 : i32
    return %c0_i32, %c0_i32_0 : i32, i32
  }
  func.func @transform_4(%arg0: i32) -> (i32, i32, i32) {
    %c0_i32 = arith.constant 0 : i32
    %c0_i32_0 = arith.constant 0 : i32
    %c0_i32_1 = arith.constant 0 : i32
    %c0_i32_2 = arith.constant 0 : i32
    return %c0_i32, %c0_i32_0, %c0_i32_1 : i32, i32, i32
  }
  func.func @transform_5(%arg0: i32) -> (i32, i32) {
    %c0_i32 = arith.constant 0 : i32
    %c0_i32_0 = arith.constant 0 : i32
    %c0_i32_1 = arith.constant 0 : i32
    return %c0_i32, %c0_i32_0 : i32, i32
  }
  func.func @transform_6(%arg0: i32) -> (i32, i32, i32) {
    %c0_i32 = arith.constant 0 : i32
    %c0_i32_0 = arith.constant 0 : i32
    %c0_i32_1 = arith.constant 0 : i32
    return %arg0, %c0_i32, %c0_i32_0 : i32, i32, i32
  }
}

</mosaic_0001>

<llo_original>
// kernel: mcn_wfk_forward.1
$region0: #{mcn_wfk_forward.1}
  #allocation0 [shape = 'u32[]', space=smem, size = 0x4, offset = 0x4, fixed_abs, tag = 'smem constant byte address 0x4 - core index']
  #allocation1 [shape = 'u32[144,128]{1,0:T(1,128)}', space=vmem, size = 0x12000, scoped, tag = 'internal scratch']
  %s0 = inlined_call_operand.vmem [shape: f32[2,42,56], index: 0, kind: input, shape index: {}]
  %s1 = inlined_call_operand.vmem [shape: f32[42,56], index: 1, kind: input, shape index: {}]
  %s2 = inlined_call_operand.vmem [shape: f32[56,64], index: 2, kind: input, shape index: {}]
  %s3 = inlined_call_operand.vmem [shape: f32[1,64], index: 3, kind: input, shape index: {}]
  %s4 = inlined_call_operand.vmem [shape: f32[5,42,64], index: 4, kind: input, shape index: {}]
  %s5 = inlined_call_operand.vmem [shape: f32[1,5], index: 5, kind: input, shape index: {}]
  %s6 = inlined_call_operand.hbm [shape: f32[2,1,5], index: 6, kind: output, shape index: {}]
  %s7 = sld [smem:[#allocation0]]
  $region57: #{mcn_wfk_forward.1} parent=0
    _
  %s9 = ssub.s32 1, %s7
  %s10 = scalar_select 0, %s9, %s7
  $region1: #{mcn_wfk_forward.1} parent=0
    #allocation2 [shape = 'u8[1024]{0}', space=vmem, size = 0x400, scoped, tag = 'output window, operand 0']
    #allocation3 [shape = 's32[2]{0}', space=sflag, size = 0x8, scoped, tag = 'scoped memory for mcn_wfk_forward.1']
    %11 = vsyncpa [#allocation3], 0
    %s12 = scalar_lea.sflag [#allocation3], 1
    %13 = vsyncpa %s12, 0
    loop: start=0, step=1, limit=4
    $region2: #{mcn_wfk_forward.1} parent=1 // loop_pre_header
      _
    $region3: #{mcn_wfk_forward.1} parent=1 // loop_header
      %s15 = sphi 0, %s19
      %p16 = scmp.ge.s32.totalorder %s15, 4
      %s25 = sphi 0, %s27
      %s28 = sphi 0, %s25
      %s29 = sphi 0, %s28
      %s45 = sphi 0, %s29
      %s49 = sphi 0, %s49
      %s51 = sphi 0, %s49
      %s52 = sphi 0, %s51
      %s66 = sphi 0, %s52
      %s70 = sphi 0, %s70
      %s72 = sphi 0, %s70
      %s73 = sphi 0, %s72
      %s87 = sphi 0, %s73
      %s91 = sphi 0, %s91
      %s93 = sphi 0, %s91
      %s94 = sphi 0, %s93
      %s108 = sphi 0, %s94
      %s112 = sphi 0, %s112
      %s114 = sphi 0, %s112
      %s115 = sphi 0, %s114
      %s129 = sphi 0, %s115
      %s133 = sphi 0, %s133
      %s135 = sphi 0, %s133
      %s136 = sphi 0, %s135
      %s150 = sphi 0, %s136
      %s156 = sphi 0, %s158
      %s159 = sphi 0, %s156
      %s160 = sphi 0, %s159
      %s176 = sphi 0, %s160
    $region4: #{mcn_wfk_forward.1} parent=1 // loop_header_branch
      %18 = sbr.rel (%p16) target = $region8
    $region5: #{mcn_wfk_forward.1} parent=1 // loop_body
      %s20 = ssub.s32 %s15, 1
      %s21 = ssub.s32 %s15, 2
      %s22 = sadd.s32 %s15, 1
      %s23 = ssub.s32 %s15, %s22
      %p24 = scmp.eq.s32.totalorder %s23, 0
      %s26 = sadd.s32 %s25, 1
      %s27 = scalar_select %p24, %s25, %s26
      %p30 = pneg %p24
      %p31 = scmp.eq.s32.totalorder %s15, 1
      %p32 = por %p30, %p31
      %p33 = scmp.ne.s32.totalorder %s25, %s28
      %p34 = scmp.eq.s32.totalorder %s15, 0
      %p35 = por %p33, %p34
      %p36 = scmp.ne.s32.totalorder %s25, %s28
      %p37 = scmp.eq.s32.totalorder %s20, 1
      %p38 = por %p36, %p37
      %p39 = scmp.ne.s32.totalorder %s28, %s29
      %p40 = scmp.eq.s32.totalorder %s20, 0
      %p41 = por %p39, %p40
      %p42 = scmp.ne.s32.totalorder %s28, %s29
      %p43 = scmp.eq.s32.totalorder %s21, 1
      %p44 = por %p42, %p43
      %p46 = scmp.ne.s32.totalorder %s29, %s45
      %p47 = scmp.eq.s32.totalorder %s21, 0
      %p48 = por %p46, %p47
      %s50 = sadd.s32 %s49, 1
      %p53 = scmp.eq.s32.totalorder %s15, 1
      %p54 = scmp.ne.s32.totalorder %s49, %s51
      %p55 = scmp.eq.s32.totalorder %s15, 0
      %p56 = por %p54, %p55
      %p57 = scmp.ne.s32.totalorder %s49, %s51
      %p58 = scmp.eq.s32.totalorder %s20, 1
      %p59 = por %p57, %p58
      %p60 = scmp.ne.s32.totalorder %s51, %s52
      %p61 = scmp.eq.s32.totalorder %s20, 0
      %p62 = por %p60, %p61
      %p63 = scmp.ne.s32.totalorder %s51, %s52
      %p64 = scmp.eq.s32.totalorder %s21, 1
      %p65 = por %p63, %p64
      %p67 = scmp.ne.s32.totalorder %s52, %s66
      %p68 = scmp.eq.s32.totalorder %s21, 0
      %p69 = por %p67, %p68
      %s71 = sadd.s32 %s70, 1
      %p74 = scmp.eq.s32.totalorder %s15, 1
      %p75 = scmp.ne.s32.totalorder %s70, %s72
      %p76 = scmp.eq.s32.totalorder %s15, 0
      %p77 = por %p75, %p76
      %p78 = scmp.ne.s32.totalorder %s70, %s72
      %p79 = scmp.eq.s32.totalorder %s20, 1
      %p80 = por %p78, %p79
      %p81 = scmp.ne.s32.totalorder %s72, %s73
      %p82 = scmp.eq.s32.totalorder %s20, 0
      %p83 = por %p81, %p82
      %p84 = scmp.ne.s32.totalorder %s72, %s73
      %p85 = scmp.eq.s32.totalorder %s21, 1
      %p86 = por %p84, %p85
      %p88 = scmp.ne.s32.totalorder %s73, %s87
      %p89 = scmp.eq.s32.totalorder %s21, 0
      %p90 = por %p88, %p89
      %s92 = sadd.s32 %s91, 1
      %p95 = scmp.eq.s32.totalorder %s15, 1
      %p96 = scmp.ne.s32.totalorder %s91, %s93
      %p97 = scmp.eq.s32.totalorder %s15, 0
      %p98 = por %p96, %p97
      %p99 = scmp.ne.s32.totalorder %s91, %s93
      %p100 = scmp.eq.s32.totalorder %s20, 1
      %p101 = por %p99, %p100
      %p102 = scmp.ne.s32.totalorder %s93, %s94
      %p103 = scmp.eq.s32.totalorder %s20, 0
      %p104 = por %p102, %p103
      %p105 = scmp.ne.s32.totalorder %s93, %s94
      %p106 = scmp.eq.s32.totalorder %s21, 1
      %p107 = por %p105, %p106
      %p109 = scmp.ne.s32.totalorder %s94, %s108
      %p110 = scmp.eq.s32.totalorder %s21, 0
      %p111 = por %p109, %p110
      %s113 = sadd.s32 %s112, 1
      %p116 = scmp.eq.s32.totalorder %s15, 1
      %p117 = scmp.ne.s32.totalorder %s112, %s114
      %p118 = scmp.eq.s32.totalorder %s15, 0
      %p119 = por %p117, %p118
      %p120 = scmp.ne.s32.totalorder %s112, %s114
      %p121 = scmp.eq.s32.totalorder %s20, 1
      %p122 = por %p120, %p121
      %p123 = scmp.ne.s32.totalorder %s114, %s115
      %p124 = scmp.eq.s32.totalorder %s20, 0
      %p125 = por %p123, %p124
      %p126 = scmp.ne.s32.totalorder %s114, %s115
      %p127 = scmp.eq.s32.totalorder %s21, 1
      %p128 = por %p126, %p127
      %p130 = scmp.ne.s32.totalorder %s115, %s129
      %p131 = scmp.eq.s32.totalorder %s21, 0
      %p132 = por %p130, %p131
      %s134 = sadd.s32 %s133, 1
      %p137 = scmp.eq.s32.totalorder %s15, 1
      %p138 = scmp.ne.s32.totalorder %s133, %s135
      %p139 = scmp.eq.s32.totalorder %s15, 0
      %p140 = por %p138, %p139
      %p141 = scmp.ne.s32.totalorder %s133, %s135
      %p142 = scmp.eq.s32.totalorder %s20, 1
      %p143 = por %p141, %p142
      %p144 = scmp.ne.s32.totalorder %s135, %s136
      %p145 = scmp.eq.s32.totalorder %s20, 0
      %p146 = por %p144, %p145
      %p147 = scmp.ne.s32.totalorder %s135, %s136
      %p148 = scmp.eq.s32.totalorder %s21, 1
      %p149 = por %p147, %p148
      %p151 = scmp.ne.s32.totalorder %s136, %s150
      %p152 = scmp.eq.s32.totalorder %s21, 0
      %p153 = por %p151, %p152
      %s154 = ssub.s32 %s15, %s22
      %p155 = scmp.eq.s32.totalorder %s154, 0
      %s157 = sadd.s32 %s156, 1
      %s158 = scalar_select %p155, %s156, %s157
      %p161 = pneg %p155
      %p162 = scmp.eq.s32.totalorder %s15, 1
      %p163 = por %p161, %p162
      %p164 = scmp.ne.s32.totalorder %s156, %s159
      %p165 = scmp.eq.s32.totalorder %s15, 0
      %p166 = por %p164, %p165
      %p167 = scmp.ne.s32.totalorder %s156, %s159
      %p168 = scmp.eq.s32.totalorder %s20, 1
      %p169 = por %p167, %p168
      %p170 = scmp.ne.s32.totalorder %s159, %s160
      %p171 = scmp.eq.s32.totalorder %s20, 0
      %p172 = por %p170, %p171
      %p173 = scmp.ne.s32.totalorder %s159, %s160
      %p174 = scmp.eq.s32.totalorder %s21, 1
      %p175 = por %p173, %p174
      %p177 = scmp.ne.s32.totalorder %s160, %s176
      %p178 = scmp.eq.s32.totalorder %s21, 0
      %p179 = por %p177, %p178
      %p180 = scmp.le.s32.totalorder 1, %s15
      %p181 = scmp.lt.s32.totalorder %s15, 3
      %p182 = pnand %p180, %p181
      %p183 = pneg %p182
      // Predicated region
      $region9: #{mcn_wfk_forward.1} parent=5 // pred_check
        _
      $region10: #{mcn_wfk_forward.1} parent=5 // pred_check_branch
        %185 = sbr.rel (%p182) target = $region12
      $region11: #{mcn_wfk_forward.1} parent=5 // pred_region
        %s186 = ssub.s32 %s15, 1
        // Predicated region
        $region13: #{mcn_wfk_forward.1} parent=11 // pred_check
          %p187 = pneg %p62
        $region14: #{mcn_wfk_forward.1} parent=11 // pred_check_branch
          %189 = sbr.rel (%p187) target = $region16
        $region15: #{mcn_wfk_forward.1} parent=11 // pred_region
          _
        $region16: #{mcn_wfk_forward.1} parent=11 // pred_fallthru
          _
        // Predicated region
        $region17: #{mcn_wfk_forward.1} parent=11 // pred_check
          %p190 = pneg %p83
        $region18: #{mcn_wfk_forward.1} parent=11 // pred_check_branch
          %192 = sbr.rel (%p190) target = $region20
        $region19: #{mcn_wfk_forward.1} parent=11 // pred_region
          _
        $region20: #{mcn_wfk_forward.1} parent=11 // pred_fallthru
          _
        // Predicated region
        $region21: #{mcn_wfk_forward.1} parent=11 // pred_check
          %p193 = pneg %p104
        $region22: #{mcn_wfk_forward.1} parent=11 // pred_check_branch
          %195 = sbr.rel (%p193) target = $region24
        $region23: #{mcn_wfk_forward.1} parent=11 // pred_region
          _
        $region24: #{mcn_wfk_forward.1} parent=11 // pred_fallthru
          _
        // Predicated region
        $region25: #{mcn_wfk_forward.1} parent=11 // pred_check
          %p196 = pneg %p125
        $region26: #{mcn_wfk_forward.1} parent=11 // pred_check_branch
          %198 = sbr.rel (%p196) target = $region28
        $region27: #{mcn_wfk_forward.1} parent=11 // pred_region
          _
        $region28: #{mcn_wfk_forward.1} parent=11 // pred_fallthru
          _
        // Predicated region
        $region29: #{mcn_wfk_forward.1} parent=11 // pred_check
          %p199 = pneg %p146
        $region30: #{mcn_wfk_forward.1} parent=11 // pred_check_branch
          %201 = sbr.rel (%p199) target = $region32
        $region31: #{mcn_wfk_forward.1} parent=11 // pred_region
          _
        $region32: #{mcn_wfk_forward.1} parent=11 // pred_fallthru
          _
      $region12: #{mcn_wfk_forward.1} parent=5 // pred_fallthru
        _
      %p202 = scmp.lt.s32.totalorder %s15, 2
      // Predicated region
      $region33: #{mcn_wfk_forward.1} parent=5 // pred_check
        %p203 = pneg %p202
      $region34: #{mcn_wfk_forward.1} parent=5 // pred_check_branch
        %205 = sbr.rel (%p203) target = $region36
      $region35: #{mcn_wfk_forward.1} parent=5 // pred_region
        // Predicated region
        $region37: #{mcn_wfk_forward.1} parent=35 // pred_check
          %p206 = pneg %p35
        $region38: #{mcn_wfk_forward.1} parent=35 // pred_check_branch
          %208 = sbr.rel (%p206) target = $region40
        $region39: #{mcn_wfk_forward.1} parent=35 // pred_region
          %p209 = scmp.lt.s32.totalorder %s15, 1
          %s210 = scalar_select %p209, %s15, 1
          %s211 = smul.addr %s210, 6
          %s212 = smul.addr %s211, 8
          %s213 = scalar_lea.vmem %s0, %s212
        $region40: #{mcn_wfk_forward.1} parent=35 // pred_fallthru
          _
      $region36: #{mcn_wfk_forward.1} parent=5 // pred_fallthru
        _
      %p214 = scmp.le.s32.totalorder 1, %s15
      %p215 = scmp.lt.s32.totalorder %s15, 3
      %p216 = pnand %p214, %p215
      %p217 = pneg %p216
      // Predicated region
      $region41: #{mcn_wfk_forward.1} parent=5 // pred_check
        _
      $region42: #{mcn_wfk_forward.1} parent=5 // pred_check_branch
        %219 = sbr.rel (%p216) target = $region44
      $region43: #{mcn_wfk_forward.1} parent=5 // pred_region
        %s220 = ssub.s32 %s15, 1
        %p221 = scmp.lt.s32.totalorder %s20, 1
        %s222 = scalar_select %p221, %s20, 1
        %s223 = smul.addr %s222, 6
        %s224 = smul.addr %s223, 8
        %s225 = scalar_lea.vmem %s0, %s224
        %p226 = pneg %p41
        %p227 = pneg %p38
        %p228 = pneg %p62
        %p229 = pneg %p59
        %p230 = pneg %p83
        %p231 = pneg %p80
        %p232 = pneg %p104
        %p233 = pneg %p101
        %p234 = pneg %p125
        %p235 = pneg %p122
        %p236 = pneg %p146
        %p237 = pneg %p143
        %p238 = pneg %p172
        %p239 = pneg %p169
        %s240 = sand.u32 %s159, 1
        %s241 = scalar_lea.sflag [#allocation3], %s240
        %s242 = sand.u32 %s159, 1
        %s243 = scalar_lea.vmem [#allocation2], %s242
        %p244 = scmp.lt.s32.totalorder %s20, 1
        %s245 = scalar_select %p244, %s20, 1
        %s246 = smul.addr %s245, 6
        %s247 = smul.addr %s246, 8
        %s248 = scalar_lea.vmem %s0, %s247
        %v249 = vld [vmem:[%s248] sm:$0xff]
        %v250 = vld [vmem:[%s248 + $0x8] sm:$0xff]
        %v251 = vld [vmem:[%s248 + $0x10] sm:$0xff]
        %v252 = vld [vmem:[%s248 + $0x18] sm:$0xff]
        %v253 = vld [vmem:[%s248 + $0x20] sm:$0xff]
        %v254 = vld [vmem:[%s248 + $0x28] sm:$0x3]
        %v255 = vld [vmem:[%s1] sm:$0xff]
        %v256 = vld [vmem:[%s1 + $0x8] sm:$0xff]
        %v257 = vld [vmem:[%s1 + $0x10] sm:$0xff]
        %v258 = vld [vmem:[%s1 + $0x18] sm:$0xff]
        %v259 = vld [vmem:[%s1 + $0x20] sm:$0xff]
        %v260 = vld [vmem:[%s1 + $0x28] sm:$0x3]
        %v261 = vmul.f32 %v249, %v255
        %v262 = vmul.f32 %v250, %v256
        %v263 = vmul.f32 %v251, %v257
        %v264 = vmul.f32 %v252, %v258
        %v265 = vmul.f32 %v253, %v259
        %v266 = vmul.f32 %v254, %v260
        %v267 = vld [vmem:[%s2] sm:$0xff]
        %v268 = vld [vmem:[%s2 + $0x8] sm:$0xff]
        %v269 = vld [vmem:[%s2 + $0x10] sm:$0xff]
        %v270 = vld [vmem:[%s2 + $0x18] sm:$0xff]
        %v271 = vld [vmem:[%s2 + $0x20] sm:$0xff]
        %v272 = vld [vmem:[%s2 + $0x28] sm:$0xff]
        %v273 = vld [vmem:[%s2 + $0x30] sm:$0xff]
        %v274 = vld [vmem:[%s3] sm:$0x1]
        %v276 = vlaneseq
        %v277 = vshrl.u32 %v276, 7
        %v278 = vsub.s32 0, %v277
        %v279 = vrot.slane %v274, %v278
        %vm281 = vcmask 457728
        %v283 = vsel %vm281, %v261, 0
        %v286 = vsel %vm281, %v262, 0
        %v289 = vsel %vm281, %v263, 0
        %v292 = vsel %vm281, %v264, 0
        %v295 = vsel %vm281, %v265, 0
        %v298 = vsel %vm281, %v266, 0
        %300 = vmatprep.subr.mxu0 0.0
        %301 = vmatpush1.msra.mxu0 0.0
        %302 = vmatprep.subr.mxu0 0.0
        %303 = vmatpush1.msra.mxu0 0.0
        %304 = vmatprep.subr.mxu0 0.0
        %305 = vmatpush1.msra.mxu0 0.0
        %306 = vmatprep.subr.mxu0 0.0
        %307 = vmatpush1.msra.mxu0 0.0
        %308 = vmatprep.subr.mxu0 0.0
        %309 = vmatpush1.msra.mxu0 0.0
        %310 = vmatprep.subr.mxu0 0.0
        %311 = vmatpush1.msra.mxu0 0.0
        %312 = vmatprep.subr.mxu0 0.0
        %313 = vmatpush1.msra.mxu0 0.0
        %314 = vmatprep.subr.mxu0 0.0
        %315 = vmatpush1.msra.mxu0 0.0
        %316 = vmatprep.subr.mxu0 0.0
        %317 = vmatpush1.msra.mxu0 0.0
        %318 = vmatprep.subr.mxu0 0.0
        %319 = vmatpush1.msra.mxu0 %v273
        %320 = vmatprep.subr.mxu0 0.0
        %321 = vmatpush1.msra.mxu0 %v272
        %322 = vmatprep.subr.mxu0 0.0
        %323 = vmatpush1.msra.mxu0 %v271
        %324 = vmatprep.subr.mxu0 0.0
        %325 = vmatpush1.msra.mxu0 %v270
        %326 = vmatprep.subr.mxu0 0.0
        %327 = vmatpush1.msra.mxu0 %v269
        %328 = vmatprep.subr.mxu0 0.0
        %329 = vmatpush1.msra.mxu0 %v268
        %330 = vmatprep.subr.mxu0 0.0
        %331 = vmatpush1.msra.mxu0 %v267
        %332 = vmatprep.subr.mxu0 0.0
        %333 = vmatpush2.msra.mxu0 0.0
        %334 = vmatprep.subr.mxu0 0.0
        %335 = vmatpush2.msra.mxu0 0.0
        %336 = vmatprep.subr.mxu0 0.0
        %337 = vmatpush2.msra.mxu0 0.0
        %338 = vmatprep.subr.mxu0 0.0
        %339 = vmatpush2.msra.mxu0 0.0
        %340 = vmatprep.subr.mxu0 0.0
        %341 = vmatpush2.msra.mxu0 0.0
        %342 = vmatprep.subr.mxu0 0.0
        %343 = vmatpush2.msra.mxu0 0.0
        %344 = vmatprep.subr.mxu0 0.0
        %345 = vmatpush2.msra.mxu0 0.0
        %346 = vmatprep.subr.mxu0 0.0
        %347 = vmatpush2.msra.mxu0 0.0
        %348 = vmatprep.subr.mxu0 0.0
        %349 = vmatpush2.msra.mxu0 0.0
        %350 = vmatprep.subr.mxu0 0.0
        %351 = vmatpush2.msra.mxu0 0.0
        %352 = vmatprep.subr.mxu0 0.0
        %353 = vmatpush2.msra.mxu0 0.0
        %354 = vmatprep.subr.mxu0 0.0
        %355 = vmatpush2.msra.mxu0 0.0
        %356 = vmatprep.subr.mxu0 0.0
        %357 = vmatpush2.msra.mxu0 0.0
        %358 = vmatprep.subr.mxu0 0.0
        %359 = vmatpush2.msra.mxu0 0.0
        %360 = vmatprep.subr.mxu0 0.0
        %361 = vmatpush2.msra.mxu0 0.0
        %362 = vmatprep.subr.mxu0 0.0
        %363 = vmatpush2.msra.mxu0 0.0
        %364 = vmatprep.mubr.f32.mxu0 0.0
        %365 = vmatmul.mubr.f32.gmra.mxu0 %v283
        %v366 = vpop.f32.mrf.mxu0
        %v367 = vadd.f32 %v279, %v366
        %v368 = vpop.f32.mrf.mxu0
        %369 = vmatprep.mubr.f32.mxu0 0.0
        %370 = vmatmul.mubr.f32.gmra.mxu0 %v286
        %v371 = vpop.f32.mrf.mxu0
        %v372 = vadd.f32 %v279, %v371
        %v373 = vpop.f32.mrf.mxu0
        %374 = vmatprep.mubr.f32.mxu0 0.0
        %375 = vmatmul.mubr.f32.gmra.mxu0 %v289
        %v376 = vpop.f32.mrf.mxu0
        %v377 = vadd.f32 %v279, %v376
        %v378 = vpop.f32.mrf.mxu0
        %379 = vmatprep.mubr.f32.mxu0 0.0
        %380 = vmatmul.mubr.f32.gmra.mxu0 %v292
        %v381 = vpop.f32.mrf.mxu0
        %v382 = vadd.f32 %v279, %v381
        %v383 = vpop.f32.mrf.mxu0
        %384 = vmatprep.mubr.f32.mxu0 0.0
        %385 = vmatmul.mubr.f32.gmra.mxu0 %v295
        %v386 = vpop.f32.mrf.mxu0
        %v387 = vadd.f32 %v279, %v386
        %v388 = vpop.f32.mrf.mxu0
        %389 = vmatprep.mubr.f32.mxu0 0.0
        %390 = vmatmul.mubr.f32.gmra.mxu0 %v298
        %v391 = vpop.f32.mrf.mxu0
        %v392 = vadd.f32 %v279, %v391
        %v393 = vpop.f32.mrf.mxu0
        %394 = vdwg.mxu0
        %v395 = vmax.f32 %v367, 0.0
        %v396 = vmax.f32 %v372, 0.0
        %v397 = vmax.f32 %v377, 0.0
        %v398 = vmax.f32 %v382, 0.0
        %v399 = vmax.f32 %v387, 0.0
        %v400 = vmax.f32 %v392, 0.0
        %v401 = vlaneseq
        %v402 = vand.u32 %v401, 127
        %v403 = vld [vmem:[%s5] sm:$0x1]
        %v404 = vld [vmem:[%s4] sm:$0xff]
        %v405 = vld [vmem:[%s4 + $0x8] sm:$0xff]
        %v406 = vld [vmem:[%s4 + $0x10] sm:$0xff]
        %v407 = vld [vmem:[%s4 + $0x18] sm:$0xff]
        %v408 = vld [vmem:[%s4 + $0x20] sm:$0xff]
        %v409 = vld [vmem:[%s4 + $0x28] sm:$0x3]
        %v410 = vmul.f32 %v395, %v404
        %v411 = vmul.f32 %v396, %v405
        %v412 = vmul.f32 %v397, %v406
        %v413 = vmul.f32 %v398, %v407
        %v414 = vmul.f32 %v399, %v408
        %v415 = vmul.f32 %v400, %v409
        %vm416 = vcmask 523264
        %v417 = vsel %vm416, %v410, 0.0
        %418 = vadd.xlane.f32.xlu0 %v417
        %v419 = vpop.xlane.xlu0 %418
        %v420 = vsel %vm416, %v411, 0.0
        %421 = vadd.xlane.f32.xlu0 %v420
        %v422 = vpop.xlane.xlu0 %421
        %v423 = vsel %vm416, %v412, 0.0
        %424 = vadd.xlane.f32.xlu0 %v423
        %v425 = vpop.xlane.xlu0 %424
        %v426 = vsel %vm416, %v413, 0.0
        %427 = vadd.xlane.f32.xlu0 %v426
        %v428 = vpop.xlane.xlu0 %427
        %v429 = vsel %vm416, %v414, 0.0
        %430 = vadd.xlane.f32.xlu0 %v429
        %v431 = vpop.xlane.xlu0 %430
        %vm432 = vcmask 517120
        %v433 = vsel %vm432, %v415, 0.0
        %434 = vadd.xlane.f32.xlu0 %v433
        %v435 = vpop.xlane.xlu0 %434
        %v436 = vadd.f32 %v419, %v422
        %v437 = vadd.f32 %v436, %v425
        %v438 = vadd.f32 %v437, %v428
        %v439 = vadd.f32 %v438, %v431
        %vm440 = vcmask 1041408
        %v441 = vsel %vm440, %v435, 0.0
        %v442 = vadd.f32 %v439, %v441
        %v443 = vrot.slane %v442, 4
        %v444 = vadd.f32 %v442, %v443
        %v445 = vrot.slane %v444, 2
        %v446 = vadd.f32 %v444, %v445
        %v447 = vrot.slane %v446, 1
        %v448 = vadd.f32 %v446, %v447
        %vm449 = vcmp.eq.s32.totalorder %v402, 0
        %v450 = vsel %vm449, %v448, 0.0
        %v451 = vadd.f32 %v403, %v450
        %s452 = scalar_lea.vmem %s4, 48
        %v453 = vld [vmem:[%s452] sm:$0xff]
        %v454 = vld [vmem:[%s452 + $0x8] sm:$0xff]
        %v455 = vld [vmem:[%s452 + $0x10] sm:$0xff]
        %v456 = vld [vmem:[%s452 + $0x18] sm:$0xff]
        %v457 = vld [vmem:[%s452 + $0x20] sm:$0xff]
        %v458 = vld [vmem:[%s452 + $0x28] sm:$0x3]
        %v459 = vmul.f32 %v395, %v453
        %v460 = vmul.f32 %v396, %v454
        %v461 = vmul.f32 %v397, %v455
        %v462 = vmul.f32 %v398, %v456
        %v463 = vmul.f32 %v399, %v457
        %v464 = vmul.f32 %v400, %v458
        %v465 = vsel %vm416, %v459, 0.0
        %466 = vadd.xlane.f32.xlu0 %v465
        %v467 = vpop.xlane.xlu0 %466
        %v468 = vsel %vm416, %v460, 0.0
        %469 = vadd.xlane.f32.xlu0 %v468
        %v470 = vpop.xlane.xlu0 %469
        %v471 = vsel %vm416, %v461, 0.0
        %472 = vadd.xlane.f32.xlu0 %v471
        %v473 = vpop.xlane.xlu0 %472
        %v474 = vsel %vm416, %v462, 0.0
        %475 = vadd.xlane.f32.xlu0 %v474
        %v476 = vpop.xlane.xlu0 %475
        %v477 = vsel %vm416, %v463, 0.0
        %478 = vadd.xlane.f32.xlu0 %v477
        %v479 = vpop.xlane.xlu0 %478
        %v480 = vsel %vm432, %v464, 0.0
        %481 = vadd.xlane.f32.xlu0 %v480
        %v482 = vpop.xlane.xlu0 %481
        %v483 = vadd.f32 %v467, %v470
        %v484 = vadd.f32 %v483, %v473
        %v485 = vadd.f32 %v484, %v476
        %v486 = vadd.f32 %v485, %v479
        %v487 = vsel %vm440, %v482, 0.0
        %v488 = vadd.f32 %v486, %v487
        %v489 = vrot.slane %v488, 4
        %v490 = vadd.f32 %v488, %v489
        %v491 = vrot.slane %v490, 2
        %v492 = vadd.f32 %v490, %v491
        %v493 = vrot.slane %v492, 1
        %v494 = vadd.f32 %v492, %v493
        %vm495 = vcmp.eq.s32.totalorder %v402, 1
        %v496 = vsel %vm495, %v494, 0.0
        %v497 = vadd.f32 %v451, %v496
        %s498 = scalar_lea.vmem %s4, 96
        %v499 = vld [vmem:[%s498] sm:$0xff]
        %v500 = vld [vmem:[%s498 + $0x8] sm:$0xff]
        %v501 = vld [vmem:[%s498 + $0x10] sm:$0xff]
        %v502 = vld [vmem:[%s498 + $0x18] sm:$0xff]
        %v503 = vld [vmem:[%s498 + $0x20] sm:$0xff]
        %v504 = vld [vmem:[%s498 + $0x28] sm:$0x3]
        %v505 = vmul.f32 %v395, %v499
        %v506 = vmul.f32 %v396, %v500
        %v507 = vmul.f32 %v397, %v501
        %v508 = vmul.f32 %v398, %v502
        %v509 = vmul.f32 %v399, %v503
        %v510 = vmul.f32 %v400, %v504
        %v511 = vsel %vm416, %v505, 0.0
        %512 = vadd.xlane.f32.xlu0 %v511
        %v513 = vpop.xlane.xlu0 %512
        %v514 = vsel %vm416, %v506, 0.0
        %515 = vadd.xlane.f32.xlu0 %v514
        %v516 = vpop.xlane.xlu0 %515
        %v517 = vsel %vm416, %v507, 0.0
        %518 = vadd.xlane.f32.xlu0 %v517
        %v519 = vpop.xlane.xlu0 %518
        %v520 = vsel %vm416, %v508, 0.0
        %521 = vadd.xlane.f32.xlu0 %v520
        %v522 = vpop.xlane.xlu0 %521
        %v523 = vsel %vm416, %v509, 0.0
        %524 = vadd.xlane.f32.xlu0 %v523
        %v525 = vpop.xlane.xlu0 %524
        %v526 = vsel %vm432, %v510, 0.0
        %527 = vadd.xlane.f32.xlu0 %v526
        %v528 = vpop.xlane.xlu0 %527
        %v529 = vadd.f32 %v513, %v516
        %v530 = vadd.f32 %v529, %v519
        %v531 = vadd.f32 %v530, %v522
        %v532 = vadd.f32 %v531, %v525
        %v533 = vsel %vm440, %v528, 0.0
        %v534 = vadd.f32 %v532, %v533
        %v535 = vrot.slane %v534, 4
        %v536 = vadd.f32 %v534, %v535
        %v537 = vrot.slane %v536, 2
        %v538 = vadd.f32 %v536, %v537
        %v539 = vrot.slane %v538, 1
        %v540 = vadd.f32 %v538, %v539
        %vm541 = vcmp.eq.s32.totalorder %v402, 2
        %v542 = vsel %vm541, %v540, 0.0
        %v543 = vadd.f32 %v497, %v542
        %s544 = scalar_lea.vmem %s4, 144
        %v545 = vld [vmem:[%s544] sm:$0xff]
        %v546 = vld [vmem:[%s544 + $0x8] sm:$0xff]
        %v547 = vld [vmem:[%s544 + $0x10] sm:$0xff]
        %v548 = vld [vmem:[%s544 + $0x18] sm:$0xff]
        %v549 = vld [vmem:[%s544 + $0x20] sm:$0xff]
        %v550 = vld [vmem:[%s544 + $0x28] sm:$0x3]
        %v551 = vmul.f32 %v395, %v545
        %v552 = vmul.f32 %v396, %v546
        %v553 = vmul.f32 %v397, %v547
        %v554 = vmul.f32 %v398, %v548
        %v555 = vmul.f32 %v399, %v549
        %v556 = vmul.f32 %v400, %v550
        %v557 = vsel %vm416, %v551, 0.0
        %558 = vadd.xlane.f32.xlu0 %v557
        %v559 = vpop.xlane.xlu0 %558
        %v560 = vsel %vm416, %v552, 0.0
        %561 = vadd.xlane.f32.xlu0 %v560
        %v562 = vpop.xlane.xlu0 %561
        %v563 = vsel %vm416, %v553, 0.0
        %564 = vadd.xlane.f32.xlu0 %v563
        %v565 = vpop.xlane.xlu0 %564
        %v566 = vsel %vm416, %v554, 0.0
        %567 = vadd.xlane.f32.xlu0 %v566
        %v568 = vpop.xlane.xlu0 %567
        %v569 = vsel %vm416, %v555, 0.0
        %570 = vadd.xlane.f32.xlu0 %v569
        %v571 = vpop.xlane.xlu0 %570
        %v572 = vsel %vm432, %v556, 0.0
        %573 = vadd.xlane.f32.xlu0 %v572
        %v574 = vpop.xlane.xlu0 %573
        %v575 = vadd.f32 %v559, %v562
        %v576 = vadd.f32 %v575, %v565
        %v577 = vadd.f32 %v576, %v568
        %v578 = vadd.f32 %v577, %v571
        %v579 = vsel %vm440, %v574, 0.0
        %v580 = vadd.f32 %v578, %v579
        %v581 = vrot.slane %v580, 4
        %v582 = vadd.f32 %v580, %v581
        %v583 = vrot.slane %v582, 2
        %v584 = vadd.f32 %v582, %v583
        %v585 = vrot.slane %v584, 1
        %v586 = vadd.f32 %v584, %v585
        %vm587 = vcmp.eq.s32.totalorder %v402, 3
        %v588 = vsel %vm587, %v586, 0.0
        %v589 = vadd.f32 %v543, %v588
        %s590 = scalar_lea.vmem %s4, 192
        %v591 = vld [vmem:[%s590] sm:$0xff]
        %v592 = vld [vmem:[%s590 + $0x8] sm:$0xff]
        %v593 = vld [vmem:[%s590 + $0x10] sm:$0xff]
        %v594 = vld [vmem:[%s590 + $0x18] sm:$0xff]
        %v595 = vld [vmem:[%s590 + $0x20] sm:$0xff]
        %v596 = vld [vmem:[%s590 + $0x28] sm:$0x3]
        %v597 = vmul.f32 %v395, %v591
        %v598 = vmul.f32 %v396, %v592
        %v599 = vmul.f32 %v397, %v593
        %v600 = vmul.f32 %v398, %v594
        %v601 = vmul.f32 %v399, %v595
        %v602 = vmul.f32 %v400, %v596
        %v603 = vsel %vm416, %v597, 0.0
        %604 = vadd.xlane.f32.xlu0 %v603
        %v605 = vpop.xlane.xlu0 %604
        %v606 = vsel %vm416, %v598, 0.0
        %607 = vadd.xlane.f32.xlu0 %v606
        %v608 = vpop.xlane.xlu0 %607
        %v609 = vsel %vm416, %v599, 0.0
        %610 = vadd.xlane.f32.xlu0 %v609
        %v611 = vpop.xlane.xlu0 %610
        %v612 = vsel %vm416, %v600, 0.0
        %613 = vadd.xlane.f32.xlu0 %v612
        %v614 = vpop.xlane.xlu0 %613
        %v615 = vsel %vm416, %v601, 0.0
        %616 = vadd.xlane.f32.xlu0 %v615
        %v617 = vpop.xlane.xlu0 %616
        %v618 = vsel %vm432, %v602, 0.0
        %619 = vadd.xlane.f32.xlu0 %v618
        %v620 = vpop.xlane.xlu0 %619
        %v621 = vadd.f32 %v605, %v608
        %v622 = vadd.f32 %v621, %v611
        %v623 = vadd.f32 %v622, %v614
        %v624 = vadd.f32 %v623, %v617
        %v625 = vsel %vm440, %v620, 0.0
        %v626 = vadd.f32 %v624, %v625
        %v627 = vrot.slane %v626, 4
        %v628 = vadd.f32 %v626, %v627
        %v629 = vrot.slane %v628, 2
        %v630 = vadd.f32 %v628, %v629
        %v631 = vrot.slane %v630, 1
        %v632 = vadd.f32 %v630, %v631
        %vm633 = vcmp.eq.s32.totalorder %v402, 4
        %v634 = vsel %vm633, %v632, 0.0
        %v635 = vadd.f32 %v589, %v634
        %vm636 = vcmask 32768
        %637 = vst.msk [vmem:[%s243] sm:$0x1] %vm636, %v635
        %s638 = sand.u32 %s159, 1
        %s639 = scalar_lea.sflag [#allocation3], %s638
        %s640 = sand.u32 %s159, 1
        %s641 = scalar_lea.vmem [#allocation2], %s640
        // Predicated region
        $region45: #{mcn_wfk_forward.1} parent=43 // pred_check
          %p642 = pneg %p169
        $region46: #{mcn_wfk_forward.1} parent=43 // pred_check_branch
          %644 = sbr.rel (%p642) target = $region48
        $region47: #{mcn_wfk_forward.1} parent=43 // pred_region
          %s646 = ssub.s32 16, 16
          %647 = vsyncadd %s639, %s646
          %s648 = smul.addr %s20, 16
          %s649 = scalar_lea.hbm %s6, %s648
          %s651 = sshll.u32 %s641, 4
          %s652 = int_to_ptr.vmem [resolvable:$true] %s651
          %654 = dma.vmem_to_hbm [thread:$0]  %s652, 16, %s649, %s639
        $region48: #{mcn_wfk_forward.1} parent=43 // pred_fallthru
          _
      $region44: #{mcn_wfk_forward.1} parent=5 // pred_fallthru
        _
      %p655 = scmp.le.s32.totalorder 2, %s15
      // Predicated region
      $region49: #{mcn_wfk_forward.1} parent=5 // pred_check
        %p656 = pneg %p655
      $region50: #{mcn_wfk_forward.1} parent=5 // pred_check_branch
        %658 = sbr.rel (%p656) target = $region52
      $region51: #{mcn_wfk_forward.1} parent=5 // pred_region
        %s659 = ssub.s32 %s15, 2
        // Predicated region
        $region53: #{mcn_wfk_forward.1} parent=51 // pred_check
          %p660 = pneg %p175
        $region54: #{mcn_wfk_forward.1} parent=51 // pred_check_branch
          %662 = sbr.rel (%p660) target = $region56
        $region55: #{mcn_wfk_forward.1} parent=51 // pred_region
          %s663 = sand.u32 %s160, 1
          %s664 = scalar_lea.sflag [#allocation3], %s663
          %s665 = sand.u32 %s160, 1
          %s666 = scalar_lea.vmem [#allocation2], %s665
          %667 = dma.done %s664, 16
        $region56: #{mcn_wfk_forward.1} parent=51 // pred_fallthru
          _
      $region52: #{mcn_wfk_forward.1} parent=5 // pred_fallthru
        _
    $region6: #{mcn_wfk_forward.1} parent=1 // loop_footer
      %s19 = sadd.s32 1, %s15
    $region7: #{mcn_wfk_forward.1} parent=1 // loop_footer_branch
      %14 = sbr.rel target = $region3
    $region8: #{mcn_wfk_forward.1} parent=1 // loop_exit
      _
    %668 = vsyncpa [#allocation3], 1
    %s669 = scalar_lea.sflag [#allocation3], 1
    %670 = vsyncpa %s669, 1

</llo_original>
